<compile_context>
chip_gen: v5e
topology: v5e:2x2
jax: 0.10.0
libtpu: 0.0.40
codegen_flags: <defaults>
</compile_context>

<pallas_src>
import functools

import jax
import jax.numpy as jnp
from jax import lax
from jax.experimental import pallas as pl
from jax.experimental.pallas import tpu as pltpu


def _lsq_kernel(x_ref, out_ref, *, reg, f, d):
    x = x_ref[...]                                   # (Bt, N, F+D) f32
    feats = x[:, :, :f]                              # (Bt, N, F)   static lane slice

    # One batched MXU pass builds the full augmented system:
    #   rows 0..F-1  : feats^T feats     (Gram matrix M, pre-regularization)
    #   rows F..F+D-1: labels^T feats    (R^T -- already in the final output layout)
    aug = jnp.einsum('bnk,bnc->bkc', x, feats,
                     preferred_element_type=jnp.float32)          # (Bt, F+D, F)

    # Add reg * I to the top (F, F) block.
    ri = lax.broadcasted_iota(jnp.int32, (f + d, f), 0)
    ci = lax.broadcasted_iota(jnp.int32, (f + d, f), 1)
    aug = aug + jnp.where(ri == ci, jnp.float32(reg), jnp.float32(0.0))

    # Column-oriented Gauss-Jordan: right-multiplying by elementary column ops reduces the top
    # block to I; the same ops turn the bottom rows into R^T M^{-1} = W^T.  reg > 0 keeps the
    # pivots positive, so no pivoting is needed.  Fully unrolled: static slices only, one
    # lane-broadcast + one sublane-broadcast rank-1 update per pivot, all on a single padded slab.
    col_ids = lax.broadcasted_iota(jnp.int32, (1, 1, f), 2)       # (1, 1, F)
    for p in range(f):
        is_p = col_ids == p
        inv_piv = 1.0 / aug[:, p:p + 1, p:p + 1]                  # (Bt, 1, 1), exact recip
        pcol = aug[:, :, p:p + 1] * inv_piv                       # (Bt, F+D, 1) normalized col
        prow = jnp.where(is_p, 0.0, aug[:, p:p + 1, :])           # (Bt, 1, F), pivot entry zeroed
        aug = jnp.where(is_p, pcol, aug - pcol * prow)            # rank-1 update + pivot-col write

    out_ref[...] = aug[:, f:, :]                                  # (Bt, D, F) = W^T


def _pick_batch_tile(b, n, f, d):
    """Largest divisor of b that fits a rough VMEM budget, leaving >=2 steps for megacore."""
    k = f + d
    lane_f = ((f + 127) // 128) * 128
    lane_k = ((k + 127) // 128) * 128
    sub_k = ((k + 7) // 8) * 8
    sub_n = ((n + 7) // 8) * 8
    per_elem = 4 * (2 * sub_n * lane_k        # double-buffered input tile
                    + 4 * sub_k * lane_f)     # aug slab + Gauss-Jordan temporaries
    cap = max(1, (8 << 20) // max(per_elem, 1))
    if b > 1:
        cap = min(cap, max(1, b // 2))        # keep >=2 grid steps for megacore sharding
    bt = 1
    for c in range(1, min(b, cap) + 1):
        if b % c == 0:
            bt = c
    return bt


def least_square_projector(x, reg, output_dim):
    """x: (B, N, F + D) -> (B, D*F, 1), matching the torch module's output."""
    b, n, kd = x.shape
    d = int(output_dim)
    f = kd - d
    x = x.astype(jnp.float32)

    bt = _pick_batch_tile(b, n, f, d)
    kern = functools.partial(_lsq_kernel, reg=float(reg), f=f, d=d)

    wt = pl.pallas_call(
        kern,
        out_shape=jax.ShapeDtypeStruct((b, d, f), jnp.float32),
        grid_spec=pltpu.PrefetchScalarGridSpec(
            num_scalar_prefetch=0,
            grid=(b // bt,),
            in_specs=[pl.BlockSpec((bt, n, kd), lambda i: (i, 0, 0))],
            out_specs=pl.BlockSpec((bt, d, f), lambda i: (i, 0, 0)),
        ),
        compiler_params=pltpu.CompilerParams(
            dimension_semantics=("parallel",)),
    )(x)

    # torch ordering: out[j*F + c] = W[c, j] = W^T[j, c] -> contiguous flatten of (D, F).
    return wt.reshape(b, d * f, 1)


if __name__ == "__main__":
    key = jax.random.PRNGKey(0)
    B, N, F, D = 2, 8, 16, 2        # batch, regress_datalen, vec_basis_len, output_dim
    reg = 1.0
    x = jax.random.normal(key, (B, N, F + D), dtype=jnp.float32)

    out = jax.block_until_ready(least_square_projector(x, reg, D))
    assert out.shape == (B, D * F, 1)

    # Plain-JAX reference (same math as the PyTorch module: block-diagonal Phi materialized).
    feats = x[:, :, :F]
    labels = x[:, :, F:]
    phi = jnp.einsum('bnf,de->bndef', feats, jnp.eye(D)).reshape(B, N * D, D * F)
    lbl = labels.reshape(B, N * D, 1)
    gram = jnp.einsum('bij,bik->bjk', phi, phi) + reg * jnp.eye(D * F)[None]
    ref = jnp.linalg.inv(gram) @ jnp.swapaxes(phi, 1, 2) @ lbl
    err = float(jnp.max(jnp.abs(out - ref)))
    assert jnp.allclose(out, ref, atol=1e-3, rtol=1e-3), err

    print("KERNEL_OK")
</pallas_src>

<mosaic_0001>
module attributes {stable_mosaic.version = 11 : i64} {
  func.func @_lsq_kernel(%arg0: i32, %arg1: memref<1x8x18xf32, #tpu.memory_space<vmem>>, %arg2: memref<1x2x16xf32, #tpu.memory_space<vmem>>) attributes {dimension_semantics = [#tpu.dimension_semantics<parallel>], iteration_bounds = array<i64: 2>, scalar_prefetch = 0 : i64, scratch_operands = 0 : i64, tpu.core_type = #tpu.core_type<tc>, window_params = [{transform_indices = @transform_0, window_bounds = array<i64: 1, 8, 18>}, {transform_indices = @transform_1, window_bounds = array<i64: 1, 2, 16>}]} {
    %c0 = arith.constant 0 : index
    %c0_0 = arith.constant 0 : index
    %c0_1 = arith.constant 0 : index
    %0 = vector.load %arg1[%c0, %c0_0, %c0_1] : memref<1x8x18xf32, #tpu.memory_space<vmem>>, vector<1x8x18xf32>
    %1 = vector.extract_strided_slice %0 {offsets = [0, 0, 0], sizes = [1, 8, 16], strides = [1, 1, 1]} : vector<1x8x18xf32> to vector<1x8x16xf32>
    "tpu.trace_start"() <{level = 10 : i32, message = "bnk,bnc->bkc"}> : () -> ()
    %cst = arith.constant dense<0.000000e+00> : vector<1x18x16xf32>
    %2 = tpu.matmul %0, %1, %cst {dimension_numbers = #tpu.dot_dimension_numbers<[1], [1], [2], [2], [0, 0, 0, 2, 1, 2], [0], [0]>} : vector<1x8x18xf32>, vector<1x8x16xf32>, vector<1x18x16xf32> -> vector<1x18x16xf32>
    "tpu.trace_stop"() : () -> ()
    %3 = tpu.iota {dimensions = array<i32: 0>} : vector<18x16xi32>
    %4 = tpu.iota {dimensions = array<i32: 1>} : vector<18x16xi32>
    %5 = arith.cmpi eq, %3, %4 : vector<18x16xi32>
    %cst_2 = arith.constant 1.000000e+00 : f32
    %cst_3 = arith.constant 0.000000e+00 : f32
    %6 = vector.broadcast %cst_2 : f32 to vector<18x16xf32>
    %7 = vector.broadcast %cst_3 : f32 to vector<18x16xf32>
    %8 = arith.select %5, %6, %7 : vector<18x16xi1>, vector<18x16xf32>
    %9 = vector.shape_cast %8 : vector<18x16xf32> to vector<1x18x16xf32>
    %10 = arith.addf %2, %9 : vector<1x18x16xf32>
    %11 = tpu.iota {dimensions = array<i32: 2>} : vector<1x1x16xi32>
    %c0_i32 = arith.constant 0 : i32
    %12 = vector.broadcast %c0_i32 : i32 to vector<1x1x16xi32>
    %13 = arith.cmpi eq, %11, %12 : vector<1x1x16xi32>
    %14 = vector.extract_strided_slice %10 {offsets = [0, 0, 0], sizes = [1, 1, 1], strides = [1, 1, 1]} : vector<1x18x16xf32> to vector<1x1x1xf32>
    %cst_4 = arith.constant 1.000000e+00 : f32
    %15 = vector.broadcast %cst_4 : f32 to vector<1x1x1xf32>
    %16 = arith.divf %15, %14 : vector<1x1x1xf32>
    %17 = vector.extract_strided_slice %10 {offsets = [0, 0, 0], sizes = [1, 18, 1], strides = [1, 1, 1]} : vector<1x18x16xf32> to vector<1x18x1xf32>
    %18 = vector.broadcast %16 : vector<1x1x1xf32> to vector<1x18x1xf32>
    %19 = arith.mulf %17, %18 : vector<1x18x1xf32>
    %20 = vector.extract_strided_slice %10 {offsets = [0, 0, 0], sizes = [1, 1, 16], strides = [1, 1, 1]} : vector<1x18x16xf32> to vector<1x1x16xf32>
    %cst_5 = arith.constant 0.000000e+00 : f32
    %21 = vector.broadcast %cst_5 : f32 to vector<1x1x16xf32>
    %22 = arith.select %13, %21, %20 : vector<1x1x16xi1>, vector<1x1x16xf32>
    %23 = vector.broadcast %19 : vector<1x18x1xf32> to vector<1x18x16xf32>
    %24 = vector.broadcast %22 : vector<1x1x16xf32> to vector<1x18x16xf32>
    %25 = arith.mulf %23, %24 : vector<1x18x16xf32>
    %26 = arith.subf %10, %25 : vector<1x18x16xf32>
    %27 = vector.shape_cast %13 : vector<1x1x16xi1> to vector<1x1x16xi1>
    %28 = vector.broadcast %27 : vector<1x1x16xi1> to vector<1x18x16xi1>
    %29 = vector.shape_cast %19 : vector<1x18x1xf32> to vector<1x18x1xf32>
    %30 = vector.broadcast %29 : vector<1x18x1xf32> to vector<1x18x16xf32>
    %31 = arith.select %28, %30, %26 : vector<1x18x16xi1>, vector<1x18x16xf32>
    %c1_i32 = arith.constant 1 : i32
    %32 = vector.broadcast %c1_i32 : i32 to vector<1x1x16xi32>
    %33 = arith.cmpi eq, %11, %32 : vector<1x1x16xi32>
    %34 = vector.extract_strided_slice %31 {offsets = [0, 1, 1], sizes = [1, 1, 1], strides = [1, 1, 1]} : vector<1x18x16xf32> to vector<1x1x1xf32>
    %cst_6 = arith.constant 1.000000e+00 : f32
    %35 = vector.broadcast %cst_6 : f32 to vector<1x1x1xf32>
    %36 = arith.divf %35, %34 : vector<1x1x1xf32>
    %37 = vector.extract_strided_slice %31 {offsets = [0, 0, 1], sizes = [1, 18, 1], strides = [1, 1, 1]} : vector<1x18x16xf32> to vector<1x18x1xf32>
    %38 = vector.broadcast %36 : vector<1x1x1xf32> to vector<1x18x1xf32>
    %39 = arith.mulf %37, %38 : vector<1x18x1xf32>
    %40 = vector.extract_strided_slice %31 {offsets = [0, 1, 0], sizes = [1, 1, 16], strides = [1, 1, 1]} : vector<1x18x16xf32> to vector<1x1x16xf32>
    %cst_7 = arith.constant 0.000000e+00 : f32
    %41 = vector.broadcast %cst_7 : f32 to vector<1x1x16xf32>
    %42 = arith.select %33, %41, %40 : vector<1x1x16xi1>, vector<1x1x16xf32>
    %43 = vector.broadcast %39 : vector<1x18x1xf32> to vector<1x18x16xf32>
    %44 = vector.broadcast %42 : vector<1x1x16xf32> to vector<1x18x16xf32>
    %45 = arith.mulf %43, %44 : vector<1x18x16xf32>
    %46 = arith.subf %31, %45 : vector<1x18x16xf32>
    %47 = vector.shape_cast %33 : vector<1x1x16xi1> to vector<1x1x16xi1>
    %48 = vector.broadcast %47 : vector<1x1x16xi1> to vector<1x18x16xi1>
    %49 = vector.shape_cast %39 : vector<1x18x1xf32> to vector<1x18x1xf32>
    %50 = vector.broadcast %49 : vector<1x18x1xf32> to vector<1x18x16xf32>
    %51 = arith.select %48, %50, %46 : vector<1x18x16xi1>, vector<1x18x16xf32>
    %c2_i32 = arith.constant 2 : i32
    %52 = vector.broadcast %c2_i32 : i32 to vector<1x1x16xi32>
    %53 = arith.cmpi eq, %11, %52 : vector<1x1x16xi32>
    %54 = vector.extract_strided_slice %51 {offsets = [0, 2, 2], sizes = [1, 1, 1], strides = [1, 1, 1]} : vector<1x18x16xf32> to vector<1x1x1xf32>
    %cst_8 = arith.constant 1.000000e+00 : f32
    %55 = vector.broadcast %cst_8 : f32 to vector<1x1x1xf32>
    %56 = arith.divf %55, %54 : vector<1x1x1xf32>
    %57 = vector.extract_strided_slice %51 {offsets = [0, 0, 2], sizes = [1, 18, 1], strides = [1, 1, 1]} : vector<1x18x16xf32> to vector<1x18x1xf32>
    %58 = vector.broadcast %56 : vector<1x1x1xf32> to vector<1x18x1xf32>
    %59 = arith.mulf %57, %58 : vector<1x18x1xf32>
    %60 = vector.extract_strided_slice %51 {offsets = [0, 2, 0], sizes = [1, 1, 16], strides = [1, 1, 1]} : vector<1x18x16xf32> to vector<1x1x16xf32>
    %cst_9 = arith.constant 0.000000e+00 : f32
    %61 = vector.broadcast %cst_9 : f32 to vector<1x1x16xf32>
    %62 = arith.select %53, %61, %60 : vector<1x1x16xi1>, vector<1x1x16xf32>
    %63 = vector.broadcast %59 : vector<1x18x1xf32> to vector<1x18x16xf32>
    %64 = vector.broadcast %62 : vector<1x1x16xf32> to vector<1x18x16xf32>
    %65 = arith.mulf %63, %64 : vector<1x18x16xf32>
    %66 = arith.subf %51, %65 : vector<1x18x16xf32>
    %67 = vector.shape_cast %53 : vector<1x1x16xi1> to vector<1x1x16xi1>
    %68 = vector.broadcast %67 : vector<1x1x16xi1> to vector<1x18x16xi1>
    %69 = vector.shape_cast %59 : vector<1x18x1xf32> to vector<1x18x1xf32>
    %70 = vector.broadcast %69 : vector<1x18x1xf32> to vector<1x18x16xf32>
    %71 = arith.select %68, %70, %66 : vector<1x18x16xi1>, vector<1x18x16xf32>
    %c3_i32 = arith.constant 3 : i32
    %72 = vector.broadcast %c3_i32 : i32 to vector<1x1x16xi32>
    %73 = arith.cmpi eq, %11, %72 : vector<1x1x16xi32>
    %74 = vector.extract_strided_slice %71 {offsets = [0, 3, 3], sizes = [1, 1, 1], strides = [1, 1, 1]} : vector<1x18x16xf32> to vector<1x1x1xf32>
    %cst_10 = arith.constant 1.000000e+00 : f32
    %75 = vector.broadcast %cst_10 : f32 to vector<1x1x1xf32>
    %76 = arith.divf %75, %74 : vector<1x1x1xf32>
    %77 = vector.extract_strided_slice %71 {offsets = [0, 0, 3], sizes = [1, 18, 1], strides = [1, 1, 1]} : vector<1x18x16xf32> to vector<1x18x1xf32>
    %78 = vector.broadcast %76 : vector<1x1x1xf32> to vector<1x18x1xf32>
    %79 = arith.mulf %77, %78 : vector<1x18x1xf32>
    %80 = vector.extract_strided_slice %71 {offsets = [0, 3, 0], sizes = [1, 1, 16], strides = [1, 1, 1]} : vector<1x18x16xf32> to vector<1x1x16xf32>
    %cst_11 = arith.constant 0.000000e+00 : f32
    %81 = vector.broadcast %cst_11 : f32 to vector<1x1x16xf32>
    %82 = arith.select %73, %81, %80 : vector<1x1x16xi1>, vector<1x1x16xf32>
    %83 = vector.broadcast %79 : vector<1x18x1xf32> to vector<1x18x16xf32>
    %84 = vector.broadcast %82 : vector<1x1x16xf32> to vector<1x18x16xf32>
    %85 = arith.mulf %83, %84 : vector<1x18x16xf32>
    %86 = arith.subf %71, %85 : vector<1x18x16xf32>
    %87 = vector.shape_cast %73 : vector<1x1x16xi1> to vector<1x1x16xi1>
    %88 = vector.broadcast %87 : vector<1x1x16xi1> to vector<1x18x16xi1>
    %89 = vector.shape_cast %79 : vector<1x18x1xf32> to vector<1x18x1xf32>
    %90 = vector.broadcast %89 : vector<1x18x1xf32> to vector<1x18x16xf32>
    %91 = arith.select %88, %90, %86 : vector<1x18x16xi1>, vector<1x18x16xf32>
    %c4_i32 = arith.constant 4 : i32
    %92 = vector.broadcast %c4_i32 : i32 to vector<1x1x16xi32>
    %93 = arith.cmpi eq, %11, %92 : vector<1x1x16xi32>
    %94 = vector.extract_strided_slice %91 {offsets = [0, 4, 4], sizes = [1, 1, 1], strides = [1, 1, 1]} : vector<1x18x16xf32> to vector<1x1x1xf32>
    %cst_12 = arith.constant 1.000000e+00 : f32
    %95 = vector.broadcast %cst_12 : f32 to vector<1x1x1xf32>
    %96 = arith.divf %95, %94 : vector<1x1x1xf32>
    %97 = vector.extract_strided_slice %91 {offsets = [0, 0, 4], sizes = [1, 18, 1], strides = [1, 1, 1]} : vector<1x18x16xf32> to vector<1x18x1xf32>
    %98 = vector.broadcast %96 : vector<1x1x1xf32> to vector<1x18x1xf32>
    %99 = arith.mulf %97, %98 : vector<1x18x1xf32>
    %100 = vector.extract_strided_slice %91 {offsets = [0, 4, 0], sizes = [1, 1, 16], strides = [1, 1, 1]} : vector<1x18x16xf32> to vector<1x1x16xf32>
    %cst_13 = arith.constant 0.000000e+00 : f32
    %101 = vector.broadcast %cst_13 : f32 to vector<1x1x16xf32>
    %102 = arith.select %93, %101, %100 : vector<1x1x16xi1>, vector<1x1x16xf32>
    %103 = vector.broadcast %99 : vector<1x18x1xf32> to vector<1x18x16xf32>
    %104 = vector.broadcast %102 : vector<1x1x16xf32> to vector<1x18x16xf32>
    %105 = arith.mulf %103, %104 : vector<1x18x16xf32>
    %106 = arith.subf %91, %105 : vector<1x18x16xf32>
    %107 = vector.shape_cast %93 : vector<1x1x16xi1> to vector<1x1x16xi1>
    %108 = vector.broadcast %107 : vector<1x1x16xi1> to vector<1x18x16xi1>
    %109 = vector.shape_cast %99 : vector<1x18x1xf32> to vector<1x18x1xf32>
    %110 = vector.broadcast %109 : vector<1x18x1xf32> to vector<1x18x16xf32>
    %111 = arith.select %108, %110, %106 : vector<1x18x16xi1>, vector<1x18x16xf32>
    %c5_i32 = arith.constant 5 : i32
    %112 = vector.broadcast %c5_i32 : i32 to vector<1x1x16xi32>
    %113 = arith.cmpi eq, %11, %112 : vector<1x1x16xi32>
    %114 = vector.extract_strided_slice %111 {offsets = [0, 5, 5], sizes = [1, 1, 1], strides = [1, 1, 1]} : vector<1x18x16xf32> to vector<1x1x1xf32>
    %cst_14 = arith.constant 1.000000e+00 : f32
    %115 = vector.broadcast %cst_14 : f32 to vector<1x1x1xf32>
    %116 = arith.divf %115, %114 : vector<1x1x1xf32>
    %117 = vector.extract_strided_slice %111 {offsets = [0, 0, 5], sizes = [1, 18, 1], strides = [1, 1, 1]} : vector<1x18x16xf32> to vector<1x18x1xf32>
    %118 = vector.broadcast %116 : vector<1x1x1xf32> to vector<1x18x1xf32>
    %119 = arith.mulf %117, %118 : vector<1x18x1xf32>
    %120 = vector.extract_strided_slice %111 {offsets = [0, 5, 0], sizes = [1, 1, 16], strides = [1, 1, 1]} : vector<1x18x16xf32> to vector<1x1x16xf32>
    %cst_15 = arith.constant 0.000000e+00 : f32
    %121 = vector.broadcast %cst_15 : f32 to vector<1x1x16xf32>
    %122 = arith.select %113, %121, %120 : vector<1x1x16xi1>, vector<1x1x16xf32>
    %123 = vector.broadcast %119 : vector<1x18x1xf32> to vector<1x18x16xf32>
    %124 = vector.broadcast %122 : vector<1x1x16xf32> to vector<1x18x16xf32>
    %125 = arith.mulf %123, %124 : vector<1x18x16xf32>
    %126 = arith.subf %111, %125 : vector<1x18x16xf32>
    %127 = vector.shape_cast %113 : vector<1x1x16xi1> to vector<1x1x16xi1>
    %128 = vector.broadcast %127 : vector<1x1x16xi1> to vector<1x18x16xi1>
    %129 = vector.shape_cast %119 : vector<1x18x1xf32> to vector<1x18x1xf32>
    %130 = vector.broadcast %129 : vector<1x18x1xf32> to vector<1x18x16xf32>
    %131 = arith.select %128, %130, %126 : vector<1x18x16xi1>, vector<1x18x16xf32>
    %c6_i32 = arith.constant 6 : i32
    %132 = vector.broadcast %c6_i32 : i32 to vector<1x1x16xi32>
    %133 = arith.cmpi eq, %11, %132 : vector<1x1x16xi32>
    %134 = vector.extract_strided_slice %131 {offsets = [0, 6, 6], sizes = [1, 1, 1], strides = [1, 1, 1]} : vector<1x18x16xf32> to vector<1x1x1xf32>
    %cst_16 = arith.constant 1.000000e+00 : f32
    %135 = vector.broadcast %cst_16 : f32 to vector<1x1x1xf32>
    %136 = arith.divf %135, %134 : vector<1x1x1xf32>
    %137 = vector.extract_strided_slice %131 {offsets = [0, 0, 6], sizes = [1, 18, 1], strides = [1, 1, 1]} : vector<1x18x16xf32> to vector<1x18x1xf32>
    %138 = vector.broadcast %136 : vector<1x1x1xf32> to vector<1x18x1xf32>
    %139 = arith.mulf %137, %138 : vector<1x18x1xf32>
    %140 = vector.extract_strided_slice %131 {offsets = [0, 6, 0], sizes = [1, 1, 16], strides = [1, 1, 1]} : vector<1x18x16xf32> to vector<1x1x16xf32>
    %cst_17 = arith.constant 0.000000e+00 : f32
    %141 = vector.broadcast %cst_17 : f32 to vector<1x1x16xf32>
    %142 = arith.select %133, %141, %140 : vector<1x1x16xi1>, vector<1x1x16xf32>
    %143 = vector.broadcast %139 : vector<1x18x1xf32> to vector<1x18x16xf32>
    %144 = vector.broadcast %142 : vector<1x1x16xf32> to vector<1x18x16xf32>
    %145 = arith.mulf %143, %144 : vector<1x18x16xf32>
    %146 = arith.subf %131, %145 : vector<1x18x16xf32>
    %147 = vector.shape_cast %133 : vector<1x1x16xi1> to vector<1x1x16xi1>
    %148 = vector.broadcast %147 : vector<1x1x16xi1> to vector<1x18x16xi1>
    %149 = vector.shape_cast %139 : vector<1x18x1xf32> to vector<1x18x1xf32>
    %150 = vector.broadcast %149 : vector<1x18x1xf32> to vector<1x18x16xf32>
    %151 = arith.select %148, %150, %146 : vector<1x18x16xi1>, vector<1x18x16xf32>
    %c7_i32 = arith.constant 7 : i32
    %152 = vector.broadcast %c7_i32 : i32 to vector<1x1x16xi32>
    %153 = arith.cmpi eq, %11, %152 : vector<1x1x16xi32>
    %154 = vector.extract_strided_slice %151 {offsets = [0, 7, 7], sizes = [1, 1, 1], strides = [1, 1, 1]} : vector<1x18x16xf32> to vector<1x1x1xf32>
    %cst_18 = arith.constant 1.000000e+00 : f32
    %155 = vector.broadcast %cst_18 : f32 to vector<1x1x1xf32>
    %156 = arith.divf %155, %154 : vector<1x1x1xf32>
    %157 = vector.extract_strided_slice %151 {offsets = [0, 0, 7], sizes = [1, 18, 1], strides = [1, 1, 1]} : vector<1x18x16xf32> to vector<1x18x1xf32>
    %158 = vector.broadcast %156 : vector<1x1x1xf32> to vector<1x18x1xf32>
    %159 = arith.mulf %157, %158 : vector<1x18x1xf32>
    %160 = vector.extract_strided_slice %151 {offsets = [0, 7, 0], sizes = [1, 1, 16], strides = [1, 1, 1]} : vector<1x18x16xf32> to vector<1x1x16xf32>
    %cst_19 = arith.constant 0.000000e+00 : f32
    %161 = vector.broadcast %cst_19 : f32 to vector<1x1x16xf32>
    %162 = arith.select %153, %161, %160 : vector<1x1x16xi1>, vector<1x1x16xf32>
    %163 = vector.broadcast %159 : vector<1x18x1xf32> to vector<1x18x16xf32>
    %164 = vector.broadcast %162 : vector<1x1x16xf32> to vector<1x18x16xf32>
    %165 = arith.mulf %163, %164 : vector<1x18x16xf32>
    %166 = arith.subf %151, %165 : vector<1x18x16xf32>
    %167 = vector.shape_cast %153 : vector<1x1x16xi1> to vector<1x1x16xi1>
    %168 = vector.broadcast %167 : vector<1x1x16xi1> to vector<1x18x16xi1>
    %169 = vector.shape_cast %159 : vector<1x18x1xf32> to vector<1x18x1xf32>
    %170 = vector.broadcast %169 : vector<1x18x1xf32> to vector<1x18x16xf32>
    %171 = arith.select %168, %170, %166 : vector<1x18x16xi1>, vector<1x18x16xf32>
    %c8_i32 = arith.constant 8 : i32
    %172 = vector.broadcast %c8_i32 : i32 to vector<1x1x16xi32>
    %173 = arith.cmpi eq, %11, %172 : vector<1x1x16xi32>
    %174 = vector.extract_strided_slice %171 {offsets = [0, 8, 8], sizes = [1, 1, 1], strides = [1, 1, 1]} : vector<1x18x16xf32> to vector<1x1x1xf32>
    %cst_20 = arith.constant 1.000000e+00 : f32
    %175 = vector.broadcast %cst_20 : f32 to vector<1x1x1xf32>
    %176 = arith.divf %175, %174 : vector<1x1x1xf32>
    %177 = vector.extract_strided_slice %171 {offsets = [0, 0, 8], sizes = [1, 18, 1], strides = [1, 1, 1]} : vector<1x18x16xf32> to vector<1x18x1xf32>
    %178 = vector.broadcast %176 : vector<1x1x1xf32> to vector<1x18x1xf32>
    %179 = arith.mulf %177, %178 : vector<1x18x1xf32>
    %180 = vector.extract_strided_slice %171 {offsets = [0, 8, 0], sizes = [1, 1, 16], strides = [1, 1, 1]} : vector<1x18x16xf32> to vector<1x1x16xf32>
    %cst_21 = arith.constant 0.000000e+00 : f32
    %181 = vector.broadcast %cst_21 : f32 to vector<1x1x16xf32>
    %182 = arith.select %173, %181, %180 : vector<1x1x16xi1>, vector<1x1x16xf32>
    %183 = vector.broadcast %179 : vector<1x18x1xf32> to vector<1x18x16xf32>
    %184 = vector.broadcast %182 : vector<1x1x16xf32> to vector<1x18x16xf32>
    %185 = arith.mulf %183, %184 : vector<1x18x16xf32>
    %186 = arith.subf %171, %185 : vector<1x18x16xf32>
    %187 = vector.shape_cast %173 : vector<1x1x16xi1> to vector<1x1x16xi1>
    %188 = vector.broadcast %187 : vector<1x1x16xi1> to vector<1x18x16xi1>
    %189 = vector.shape_cast %179 : vector<1x18x1xf32> to vector<1x18x1xf32>
    %190 = vector.broadcast %189 : vector<1x18x1xf32> to vector<1x18x16xf32>
    %191 = arith.select %188, %190, %186 : vector<1x18x16xi1>, vector<1x18x16xf32>
    %c9_i32 = arith.constant 9 : i32
    %192 = vector.broadcast %c9_i32 : i32 to vector<1x1x16xi32>
    %193 = arith.cmpi eq, %11, %192 : vector<1x1x16xi32>
    %194 = vector.extract_strided_slice %191 {offsets = [0, 9, 9], sizes = [1, 1, 1], strides = [1, 1, 1]} : vector<1x18x16xf32> to vector<1x1x1xf32>
    %cst_22 = arith.constant 1.000000e+00 : f32
    %195 = vector.broadcast %cst_22 : f32 to vector<1x1x1xf32>
    %196 = arith.divf %195, %194 : vector<1x1x1xf32>
    %197 = vector.extract_strided_slice %191 {offsets = [0, 0, 9], sizes = [1, 18, 1], strides = [1, 1, 1]} : vector<1x18x16xf32> to vector<1x18x1xf32>
    %198 = vector.broadcast %196 : vector<1x1x1xf32> to vector<1x18x1xf32>
    %199 = arith.mulf %197, %198 : vector<1x18x1xf32>
    %200 = vector.extract_strided_slice %191 {offsets = [0, 9, 0], sizes = [1, 1, 16], strides = [1, 1, 1]} : vector<1x18x16xf32> to vector<1x1x16xf32>
    %cst_23 = arith.constant 0.000000e+00 : f32
    %201 = vector.broadcast %cst_23 : f32 to vector<1x1x16xf32>
    %202 = arith.select %193, %201, %200 : vector<1x1x16xi1>, vector<1x1x16xf32>
    %203 = vector.broadcast %199 : vector<1x18x1xf32> to vector<1x18x16xf32>
    %204 = vector.broadcast %202 : vector<1x1x16xf32> to vector<1x18x16xf32>
    %205 = arith.mulf %203, %204 : vector<1x18x16xf32>
    %206 = arith.subf %191, %205 : vector<1x18x16xf32>
    %207 = vector.shape_cast %193 : vector<1x1x16xi1> to vector<1x1x16xi1>
    %208 = vector.broadcast %207 : vector<1x1x16xi1> to vector<1x18x16xi1>
    %209 = vector.shape_cast %199 : vector<1x18x1xf32> to vector<1x18x1xf32>
    %210 = vector.broadcast %209 : vector<1x18x1xf32> to vector<1x18x16xf32>
    %211 = arith.select %208, %210, %206 : vector<1x18x16xi1>, vector<1x18x16xf32>
    %c10_i32 = arith.constant 10 : i32
    %212 = vector.broadcast %c10_i32 : i32 to vector<1x1x16xi32>
    %213 = arith.cmpi eq, %11, %212 : vector<1x1x16xi32>
    %214 = vector.extract_strided_slice %211 {offsets = [0, 10, 10], sizes = [1, 1, 1], strides = [1, 1, 1]} : vector<1x18x16xf32> to vector<1x1x1xf32>
    %cst_24 = arith.constant 1.000000e+00 : f32
    %215 = vector.broadcast %cst_24 : f32 to vector<1x1x1xf32>
    %216 = arith.divf %215, %214 : vector<1x1x1xf32>
    %217 = vector.extract_strided_slice %211 {offsets = [0, 0, 10], sizes = [1, 18, 1], strides = [1, 1, 1]} : vector<1x18x16xf32> to vector<1x18x1xf32>
    %218 = vector.broadcast %216 : vector<1x1x1xf32> to vector<1x18x1xf32>
    %219 = arith.mulf %217, %218 : vector<1x18x1xf32>
    %220 = vector.extract_strided_slice %211 {offsets = [0, 10, 0], sizes = [1, 1, 16], strides = [1, 1, 1]} : vector<1x18x16xf32> to vector<1x1x16xf32>
    %cst_25 = arith.constant 0.000000e+00 : f32
    %221 = vector.broadcast %cst_25 : f32 to vector<1x1x16xf32>
    %222 = arith.select %213, %221, %220 : vector<1x1x16xi1>, vector<1x1x16xf32>
    %223 = vector.broadcast %219 : vector<1x18x1xf32> to vector<1x18x16xf32>
    %224 = vector.broadcast %222 : vector<1x1x16xf32> to vector<1x18x16xf32>
    %225 = arith.mulf %223, %224 : vector<1x18x16xf32>
    %226 = arith.subf %211, %225 : vector<1x18x16xf32>
    %227 = vector.shape_cast %213 : vector<1x1x16xi1> to vector<1x1x16xi1>
    %228 = vector.broadcast %227 : vector<1x1x16xi1> to vector<1x18x16xi1>
    %229 = vector.shape_cast %219 : vector<1x18x1xf32> to vector<1x18x1xf32>
    %230 = vector.broadcast %229 : vector<1x18x1xf32> to vector<1x18x16xf32>
    %231 = arith.select %228, %230, %226 : vector<1x18x16xi1>, vector<1x18x16xf32>
    %c11_i32 = arith.constant 11 : i32
    %232 = vector.broadcast %c11_i32 : i32 to vector<1x1x16xi32>
    %233 = arith.cmpi eq, %11, %232 : vector<1x1x16xi32>
    %234 = vector.extract_strided_slice %231 {offsets = [0, 11, 11], sizes = [1, 1, 1], strides = [1, 1, 1]} : vector<1x18x16xf32> to vector<1x1x1xf32>
    %cst_26 = arith.constant 1.000000e+00 : f32
    %235 = vector.broadcast %cst_26 : f32 to vector<1x1x1xf32>
    %236 = arith.divf %235, %234 : vector<1x1x1xf32>
    %237 = vector.extract_strided_slice %231 {offsets = [0, 0, 11], sizes = [1, 18, 1], strides = [1, 1, 1]} : vector<1x18x16xf32> to vector<1x18x1xf32>
    %238 = vector.broadcast %236 : vector<1x1x1xf32> to vector<1x18x1xf32>
    %239 = arith.mulf %237, %238 : vector<1x18x1xf32>
    %240 = vector.extract_strided_slice %231 {offsets = [0, 11, 0], sizes = [1, 1, 16], strides = [1, 1, 1]} : vector<1x18x16xf32> to vector<1x1x16xf32>
    %cst_27 = arith.constant 0.000000e+00 : f32
    %241 = vector.broadcast %cst_27 : f32 to vector<1x1x16xf32>
    %242 = arith.select %233, %241, %240 : vector<1x1x16xi1>, vector<1x1x16xf32>
    %243 = vector.broadcast %239 : vector<1x18x1xf32> to vector<1x18x16xf32>
    %244 = vector.broadcast %242 : vector<1x1x16xf32> to vector<1x18x16xf32>
    %245 = arith.mulf %243, %244 : vector<1x18x16xf32>
    %246 = arith.subf %231, %245 : vector<1x18x16xf32>
    %247 = vector.shape_cast %233 : vector<1x1x16xi1> to vector<1x1x16xi1>
    %248 = vector.broadcast %247 : vector<1x1x16xi1> to vector<1x18x16xi1>
    %249 = vector.shape_cast %239 : vector<1x18x1xf32> to vector<1x18x1xf32>
    %250 = vector.broadcast %249 : vector<1x18x1xf32> to vector<1x18x16xf32>
    %251 = arith.select %248, %250, %246 : vector<1x18x16xi1>, vector<1x18x16xf32>
    %c12_i32 = arith.constant 12 : i32
    %252 = vector.broadcast %c12_i32 : i32 to vector<1x1x16xi32>
    %253 = arith.cmpi eq, %11, %252 : vector<1x1x16xi32>
    %254 = vector.extract_strided_slice %251 {offsets = [0, 12, 12], sizes = [1, 1, 1], strides = [1, 1, 1]} : vector<1x18x16xf32> to vector<1x1x1xf32>
    %cst_28 = arith.constant 1.000000e+00 : f32
    %255 = vector.broadcast %cst_28 : f32 to vector<1x1x1xf32>
    %256 = arith.divf %255, %254 : vector<1x1x1xf32>
    %257 = vector.extract_strided_slice %251 {offsets = [0, 0, 12], sizes = [1, 18, 1], strides = [1, 1, 1]} : vector<1x18x16xf32> to vector<1x18x1xf32>
    %258 = vector.broadcast %256 : vector<1x1x1xf32> to vector<1x18x1xf32>
    %259 = arith.mulf %257, %258 : vector<1x18x1xf32>
    %260 = vector.extract_strided_slice %251 {offsets = [0, 12, 0], sizes = [1, 1, 16], strides = [1, 1, 1]} : vector<1x18x16xf32> to vector<1x1x16xf32>
    %cst_29 = arith.constant 0.000000e+00 : f32
    %261 = vector.broadcast %cst_29 : f32 to vector<1x1x16xf32>
    %262 = arith.select %253, %261, %260 : vector<1x1x16xi1>, vector<1x1x16xf32>
    %263 = vector.broadcast %259 : vector<1x18x1xf32> to vector<1x18x16xf32>
    %264 = vector.broadcast %262 : vector<1x1x16xf32> to vector<1x18x16xf32>
    %265 = arith.mulf %263, %264 : vector<1x18x16xf32>
    %266 = arith.subf %251, %265 : vector<1x18x16xf32>
    %267 = vector.shape_cast %253 : vector<1x1x16xi1> to vector<1x1x16xi1>
    %268 = vector.broadcast %267 : vector<1x1x16xi1> to vector<1x18x16xi1>
    %269 = vector.shape_cast %259 : vector<1x18x1xf32> to vector<1x18x1xf32>
    %270 = vector.broadcast %269 : vector<1x18x1xf32> to vector<1x18x16xf32>
    %271 = arith.select %268, %270, %266 : vector<1x18x16xi1>, vector<1x18x16xf32>
    %c13_i32 = arith.constant 13 : i32
    %272 = vector.broadcast %c13_i32 : i32 to vector<1x1x16xi32>
    %273 = arith.cmpi eq, %11, %272 : vector<1x1x16xi32>
    %274 = vector.extract_strided_slice %271 {offsets = [0, 13, 13], sizes = [1, 1, 1], strides = [1, 1, 1]} : vector<1x18x16xf32> to vector<1x1x1xf32>
    %cst_30 = arith.constant 1.000000e+00 : f32
    %275 = vector.broadcast %cst_30 : f32 to vector<1x1x1xf32>
    %276 = arith.divf %275, %274 : vector<1x1x1xf32>
    %277 = vector.extract_strided_slice %271 {offsets = [0, 0, 13], sizes = [1, 18, 1], strides = [1, 1, 1]} : vector<1x18x16xf32> to vector<1x18x1xf32>
    %278 = vector.broadcast %276 : vector<1x1x1xf32> to vector<1x18x1xf32>
    %279 = arith.mulf %277, %278 : vector<1x18x1xf32>
    %280 = vector.extract_strided_slice %271 {offsets = [0, 13, 0], sizes = [1, 1, 16], strides = [1, 1, 1]} : vector<1x18x16xf32> to vector<1x1x16xf32>
    %cst_31 = arith.constant 0.000000e+00 : f32
    %281 = vector.broadcast %cst_31 : f32 to vector<1x1x16xf32>
    %282 = arith.select %273, %281, %280 : vector<1x1x16xi1>, vector<1x1x16xf32>
    %283 = vector.broadcast %279 : vector<1x18x1xf32> to vector<1x18x16xf32>
    %284 = vector.broadcast %282 : vector<1x1x16xf32> to vector<1x18x16xf32>
    %285 = arith.mulf %283, %284 : vector<1x18x16xf32>
    %286 = arith.subf %271, %285 : vector<1x18x16xf32>
    %287 = vector.shape_cast %273 : vector<1x1x16xi1> to vector<1x1x16xi1>
    %288 = vector.broadcast %287 : vector<1x1x16xi1> to vector<1x18x16xi1>
    %289 = vector.shape_cast %279 : vector<1x18x1xf32> to vector<1x18x1xf32>
    %290 = vector.broadcast %289 : vector<1x18x1xf32> to vector<1x18x16xf32>
    %291 = arith.select %288, %290, %286 : vector<1x18x16xi1>, vector<1x18x16xf32>
    %c14_i32 = arith.constant 14 : i32
    %292 = vector.broadcast %c14_i32 : i32 to vector<1x1x16xi32>
    %293 = arith.cmpi eq, %11, %292 : vector<1x1x16xi32>
    %294 = vector.extract_strided_slice %291 {offsets = [0, 14, 14], sizes = [1, 1, 1], strides = [1, 1, 1]} : vector<1x18x16xf32> to vector<1x1x1xf32>
    %cst_32 = arith.constant 1.000000e+00 : f32
    %295 = vector.broadcast %cst_32 : f32 to vector<1x1x1xf32>
    %296 = arith.divf %295, %294 : vector<1x1x1xf32>
    %297 = vector.extract_strided_slice %291 {offsets = [0, 0, 14], sizes = [1, 18, 1], strides = [1, 1, 1]} : vector<1x18x16xf32> to vector<1x18x1xf32>
    %298 = vector.broadcast %296 : vector<1x1x1xf32> to vector<1x18x1xf32>
    %299 = arith.mulf %297, %298 : vector<1x18x1xf32>
    %300 = vector.extract_strided_slice %291 {offsets = [0, 14, 0], sizes = [1, 1, 16], strides = [1, 1, 1]} : vector<1x18x16xf32> to vector<1x1x16xf32>
    %cst_33 = arith.constant 0.000000e+00 : f32
    %301 = vector.broadcast %cst_33 : f32 to vector<1x1x16xf32>
    %302 = arith.select %293, %301, %300 : vector<1x1x16xi1>, vector<1x1x16xf32>
    %303 = vector.broadcast %299 : vector<1x18x1xf32> to vector<1x18x16xf32>
    %304 = vector.broadcast %302 : vector<1x1x16xf32> to vector<1x18x16xf32>
    %305 = arith.mulf %303, %304 : vector<1x18x16xf32>
    %306 = arith.subf %291, %305 : vector<1x18x16xf32>
    %307 = vector.shape_cast %293 : vector<1x1x16xi1> to vector<1x1x16xi1>
    %308 = vector.broadcast %307 : vector<1x1x16xi1> to vector<1x18x16xi1>
    %309 = vector.shape_cast %299 : vector<1x18x1xf32> to vector<1x18x1xf32>
    %310 = vector.broadcast %309 : vector<1x18x1xf32> to vector<1x18x16xf32>
    %311 = arith.select %308, %310, %306 : vector<1x18x16xi1>, vector<1x18x16xf32>
    %c15_i32 = arith.constant 15 : i32
    %312 = vector.broadcast %c15_i32 : i32 to vector<1x1x16xi32>
    %313 = arith.cmpi eq, %11, %312 : vector<1x1x16xi32>
    %314 = vector.extract_strided_slice %311 {offsets = [0, 15, 15], sizes = [1, 1, 1], strides = [1, 1, 1]} : vector<1x18x16xf32> to vector<1x1x1xf32>
    %cst_34 = arith.constant 1.000000e+00 : f32
    %315 = vector.broadcast %cst_34 : f32 to vector<1x1x1xf32>
    %316 = arith.divf %315, %314 : vector<1x1x1xf32>
    %317 = vector.extract_strided_slice %311 {offsets = [0, 0, 15], sizes = [1, 18, 1], strides = [1, 1, 1]} : vector<1x18x16xf32> to vector<1x18x1xf32>
    %318 = vector.broadcast %316 : vector<1x1x1xf32> to vector<1x18x1xf32>
    %319 = arith.mulf %317, %318 : vector<1x18x1xf32>
    %320 = vector.extract_strided_slice %311 {offsets = [0, 15, 0], sizes = [1, 1, 16], strides = [1, 1, 1]} : vector<1x18x16xf32> to vector<1x1x16xf32>
    %cst_35 = arith.constant 0.000000e+00 : f32
    %321 = vector.broadcast %cst_35 : f32 to vector<1x1x16xf32>
    %322 = arith.select %313, %321, %320 : vector<1x1x16xi1>, vector<1x1x16xf32>
    %323 = vector.broadcast %319 : vector<1x18x1xf32> to vector<1x18x16xf32>
    %324 = vector.broadcast %322 : vector<1x1x16xf32> to vector<1x18x16xf32>
    %325 = arith.mulf %323, %324 : vector<1x18x16xf32>
    %326 = arith.subf %311, %325 : vector<1x18x16xf32>
    %327 = vector.shape_cast %313 : vector<1x1x16xi1> to vector<1x1x16xi1>
    %328 = vector.broadcast %327 : vector<1x1x16xi1> to vector<1x18x16xi1>
    %329 = vector.shape_cast %319 : vector<1x18x1xf32> to vector<1x18x1xf32>
    %330 = vector.broadcast %329 : vector<1x18x1xf32> to vector<1x18x16xf32>
    %331 = arith.select %328, %330, %326 : vector<1x18x16xi1>, vector<1x18x16xf32>
    %332 = vector.extract_strided_slice %331 {offsets = [0, 16, 0], sizes = [1, 2, 16], strides = [1, 1, 1]} : vector<1x18x16xf32> to vector<1x2x16xf32>
    %c0_36 = arith.constant 0 : index
    %c0_37 = arith.constant 0 : index
    %c0_38 = arith.constant 0 : index
    %333 = vector.load %arg2[%c0_36, %c0_37, %c0_38] : memref<1x2x16xf32, #tpu.memory_space<vmem>>, vector<1x2x16xf32>
    tpu.vector_store %arg2[%c0_36, %c0_37, %c0_38], %332 {strides = array<i32>} : memref<1x2x16xf32, #tpu.memory_space<vmem>>, vector<1x2x16xf32>,
    return
  }
  func.func @transform_0(%arg0: i32) -> (i32, i32, i32) {
    %c0_i32 = arith.constant 0 : i32
    %c0_i32_0 = arith.constant 0 : i32
    %c0_i32_1 = arith.constant 0 : i32
    return %arg0, %c0_i32, %c0_i32_0 : i32, i32, i32
  }
  func.func @transform_1(%arg0: i32) -> (i32, i32, i32) {
    %c0_i32 = arith.constant 0 : i32
    %c0_i32_0 = arith.constant 0 : i32
    %c0_i32_1 = arith.constant 0 : i32
    return %arg0, %c0_i32, %c0_i32_0 : i32, i32, i32
  }
}

</mosaic_0001>

<llo_original>
// kernel: tpu_custom_call.1
$region0: #{tpu_custom_call.1}
  #allocation0 [shape = 'u32[]', space=smem, size = 0x4, offset = 0x4, fixed_abs, tag = 'smem constant byte address 0x4 - core index']
  #allocation1 [shape = 'u32[72,128]{1,0:T(1,128)}', space=vmem, size = 0x9000, scoped, tag = 'internal scratch']
  %s0 = inlined_call_operand.hbm [shape: f32[2,8,18], index: 0, kind: input, shape index: {}]
  %s1 = inlined_call_operand.hbm [shape: f32[2,2,16], index: 1, kind: output, shape index: {}]
  %s2 = sld [smem:[#allocation0]]
  $region41: #{tpu_custom_call.1} parent=0
    _
  %s4 = ssub.s32 1, %s2
  %s5 = scalar_select 0, %s4, %s2
  $region1: #{tpu_custom_call.1} parent=0
    #allocation2 [shape = 'u8[8192]{0}', space=vmem, size = 0x2000, scoped, tag = 'input window, operand 0']
    #allocation3 [shape = 's32[2]{0}', space=sflag, size = 0x8, scoped, tag = 'scoped memory for tpu_custom_call.1']
    #allocation4 [shape = 's32[2]{0}', space=sflag, size = 0x8, scoped, tag = 'scoped memory for tpu_custom_call.1']
    #allocation5 [shape = 'u8[2048]{0}', space=vmem, size = 0x800, scoped, tag = 'output window, operand 0']
    %6 = vsyncpa [#allocation3], 0
    %s7 = scalar_lea.sflag [#allocation3], 1
    %8 = vsyncpa %s7, 0
    %9 = vsyncpa [#allocation4], 0
    %s10 = scalar_lea.sflag [#allocation4], 1
    %11 = vsyncpa %s10, 0
    loop: start=0, step=1, limit=4
    $region2: #{tpu_custom_call.1} parent=1 // loop_pre_header
      _
    $region3: #{tpu_custom_call.1} parent=1 // loop_header
      %s13 = sphi 0, %s17
      %p14 = scmp.ge.s32.totalorder %s13, 4
      %s23 = sphi 0, %s25
      %s26 = sphi 0, %s23
      %s27 = sphi 0, %s26
      %s43 = sphi 0, %s27
      %s49 = sphi 0, %s51
      %s52 = sphi 0, %s49
      %s53 = sphi 0, %s52
      %s69 = sphi 0, %s53
    $region4: #{tpu_custom_call.1} parent=1 // loop_header_branch
      %16 = sbr.rel (%p14) target = $region8
    $region5: #{tpu_custom_call.1} parent=1 // loop_body
      %s18 = ssub.s32 %s13, 1
      %s19 = ssub.s32 %s13, 2
      %s20 = sadd.s32 %s13, 1
      %s21 = ssub.s32 %s13, %s20
      %p22 = scmp.eq.s32.totalorder %s21, 0
      %s24 = sadd.s32 %s23, 1
      %s25 = scalar_select %p22, %s23, %s24
      %p28 = pneg %p22
      %p29 = scmp.eq.s32.totalorder %s13, 1
      %p30 = por %p28, %p29
      %p31 = scmp.ne.s32.totalorder %s23, %s26
      %p32 = scmp.eq.s32.totalorder %s13, 0
      %p33 = por %p31, %p32
      %p34 = scmp.ne.s32.totalorder %s23, %s26
      %p35 = scmp.eq.s32.totalorder %s18, 1
      %p36 = por %p34, %p35
      %p37 = scmp.ne.s32.totalorder %s26, %s27
      %p38 = scmp.eq.s32.totalorder %s18, 0
      %p39 = por %p37, %p38
      %p40 = scmp.ne.s32.totalorder %s26, %s27
      %p41 = scmp.eq.s32.totalorder %s19, 1
      %p42 = por %p40, %p41
      %p44 = scmp.ne.s32.totalorder %s27, %s43
      %p45 = scmp.eq.s32.totalorder %s19, 0
      %p46 = por %p44, %p45
      %s47 = ssub.s32 %s13, %s20
      %p48 = scmp.eq.s32.totalorder %s47, 0
      %s50 = sadd.s32 %s49, 1
      %s51 = scalar_select %p48, %s49, %s50
      %p54 = pneg %p48
      %p55 = scmp.eq.s32.totalorder %s13, 1
      %p56 = por %p54, %p55
      %p57 = scmp.ne.s32.totalorder %s49, %s52
      %p58 = scmp.eq.s32.totalorder %s13, 0
      %p59 = por %p57, %p58
      %p60 = scmp.ne.s32.totalorder %s49, %s52
      %p61 = scmp.eq.s32.totalorder %s18, 1
      %p62 = por %p60, %p61
      %p63 = scmp.ne.s32.totalorder %s52, %s53
      %p64 = scmp.eq.s32.totalorder %s18, 0
      %p65 = por %p63, %p64
      %p66 = scmp.ne.s32.totalorder %s52, %s53
      %p67 = scmp.eq.s32.totalorder %s19, 1
      %p68 = por %p66, %p67
      %p70 = scmp.ne.s32.totalorder %s53, %s69
      %p71 = scmp.eq.s32.totalorder %s19, 0
      %p72 = por %p70, %p71
      %p73 = scmp.le.s32.totalorder 1, %s13
      %p74 = scmp.lt.s32.totalorder %s13, 3
      %p75 = pnand %p73, %p74
      %p76 = pneg %p75
      // Predicated region
      $region9: #{tpu_custom_call.1} parent=5 // pred_check
        _
      $region10: #{tpu_custom_call.1} parent=5 // pred_check_branch
        %78 = sbr.rel (%p75) target = $region12
      $region11: #{tpu_custom_call.1} parent=5 // pred_region
        %s79 = ssub.s32 %s13, 1
      $region12: #{tpu_custom_call.1} parent=5 // pred_fallthru
        _
      %p80 = scmp.lt.s32.totalorder %s13, 2
      // Predicated region
      $region13: #{tpu_custom_call.1} parent=5 // pred_check
        %p81 = pneg %p80
      $region14: #{tpu_custom_call.1} parent=5 // pred_check_branch
        %83 = sbr.rel (%p81) target = $region16
      $region15: #{tpu_custom_call.1} parent=5 // pred_region
        // Predicated region
        $region17: #{tpu_custom_call.1} parent=15 // pred_check
          %p84 = pneg %p33
        $region18: #{tpu_custom_call.1} parent=15 // pred_check_branch
          %86 = sbr.rel (%p84) target = $region20
        $region19: #{tpu_custom_call.1} parent=15 // pred_region
          %s87 = sand.u32 %s23, 1
          %s88 = scalar_lea.sflag [#allocation3], %s87
          %s89 = sand.u32 %s23, 1
          %s90 = smul.addr %s89, 8
          %s91 = scalar_lea.vmem [#allocation2], %s90
          %93 = vsyncadd %s88, 0
          %s94 = smul.addr %s13, 8
          %s95 = scalar_lea.hbm %s0, %s94
          %s97 = sshll.u32 %s95, 4
          %s98 = int_to_ptr.hbm [resolvable:$true] %s97
          %s99 = sshll.u32 %s91, 4
          %s100 = int_to_ptr.vmem [resolvable:$true] %s99
          %102 = dma.hbm_to_vmem [thread:$0]  %s98, 128, %s100, %s88
        $region20: #{tpu_custom_call.1} parent=15 // pred_fallthru
          _
      $region16: #{tpu_custom_call.1} parent=5 // pred_fallthru
        _
      %p103 = scmp.le.s32.totalorder 1, %s13
      %p104 = scmp.lt.s32.totalorder %s13, 3
      %p105 = pnand %p103, %p104
      %p106 = pneg %p105
      // Predicated region
      $region21: #{tpu_custom_call.1} parent=5 // pred_check
        _
      $region22: #{tpu_custom_call.1} parent=5 // pred_check_branch
        %108 = sbr.rel (%p105) target = $region24
      $region23: #{tpu_custom_call.1} parent=5 // pred_region
        %s109 = ssub.s32 %s13, 1
        %s110 = sand.u32 %s26, 1
        %s111 = scalar_lea.sflag [#allocation3], %s110
        %s112 = sand.u32 %s26, 1
        %s113 = smul.addr %s112, 8
        %s114 = scalar_lea.vmem [#allocation2], %s113
        // Predicated region
        $region25: #{tpu_custom_call.1} parent=23 // pred_check
          %p115 = pneg %p39
        $region26: #{tpu_custom_call.1} parent=23 // pred_check_branch
          %117 = sbr.rel (%p115) target = $region28
        $region27: #{tpu_custom_call.1} parent=23 // pred_region
          %119 = dma.done %s111, 128
        $region28: #{tpu_custom_call.1} parent=23 // pred_fallthru
          _
        %s120 = sand.u32 %s26, 1
        %s121 = scalar_lea.sflag [#allocation3], %s120
        %s122 = sand.u32 %s26, 1
        %s123 = smul.addr %s122, 8
        %s124 = scalar_lea.vmem [#allocation2], %s123
        %p125 = pneg %p39
        %p126 = pneg %p36
        %p127 = pneg %p65
        %p128 = pneg %p62
        %s129 = sand.u32 %s52, 1
        %s130 = scalar_lea.sflag [#allocation4], %s129
        %s131 = sand.u32 %s52, 1
        %s132 = smul.addr %s131, 2
        %s133 = scalar_lea.vmem [#allocation5], %s132
        %v134 = vld [vmem:[%s114] sm:$0xff]
        %v135 = vlaneseq
        %v136 = vshrl.u32 %v135, 7
        %v137 = vadd.s32 %v136, 8
        %v138 = vadd.s32 %v136, 16
        %v139 = vlaneseq
        %v140 = vand.u32 %v139, 127
        %vm141 = vcmp.eq.s32.totalorder %v136, %v140
        %vm142 = vcmp.eq.s32.totalorder %v137, %v140
        %vm143 = vcmp.eq.s32.totalorder %v138, %v140
        %v144 = vsel %vm141, 1.0, 0.0
        %v145 = vsel %vm142, 1.0, 0.0
        %v146 = vsel %vm143, 1.0, 0.0
        %147 = vxpose.xlu0.b32.start [1/16] %v134, 128
        %148 = vxpose.xlu0.b32.cont [2/16] 0.0, 128
        %149 = vxpose.xlu0.b32.cont [3/16] 0.0, 128
        %150 = vxpose.xlu0.b32.cont [4/16] 0.0, 128
        %151 = vxpose.xlu0.b32.cont [5/16] 0.0, 128
        %152 = vxpose.xlu0.b32.cont [6/16] 0.0, 128
        %153 = vxpose.xlu0.b32.cont [7/16] 0.0, 128
        %154 = vxpose.xlu0.b32.cont [8/16] 0.0, 128
        %155 = vxpose.xlu0.b32.cont [9/16] 0.0, 128
        %156 = vxpose.xlu0.b32.cont [10/16] 0.0, 128
        %157 = vxpose.xlu0.b32.cont [11/16] 0.0, 128
        %158 = vxpose.xlu0.b32.cont [12/16] 0.0, 128
        %159 = vxpose.xlu0.b32.cont [13/16] 0.0, 128
        %160 = vxpose.xlu0.b32.cont [14/16] 0.0, 128
        %161 = vxpose.xlu0.b32.cont [15/16] 0.0, 128
        %162 = vxpose.xlu0.b32.end [16/16] 0.0, 128
        %v163 = vpop.trf.xlu0
        %v164 = vpop.trf.xlu0
        %v165 = vpop.trf.xlu0
        %v166 = vpop.trf.xlu0
        %v167 = vpop.trf.xlu0
        %v168 = vpop.trf.xlu0
        %v169 = vpop.trf.xlu0
        %v170 = vpop.trf.xlu0
        %v171 = vpop.trf.xlu0
        %v172 = vpop.trf.xlu0
        %v173 = vpop.trf.xlu0
        %v174 = vpop.trf.xlu0
        %v175 = vpop.trf.xlu0
        %v176 = vpop.trf.xlu0
        %v177 = vpop.trf.xlu0
        %v178 = vpop.trf.xlu0
        %vm179 = vcmask 64512
        %v181 = vsel %vm179, %v163, 0
        %v184 = vsel %vm179, %v164, 0
        %v187 = vsel %vm179, %v165, 0
        %189 = vmatpush.msra.mxu0 0.0
        %190 = vmatpush.msra.mxu0 0.0
        %191 = vmatpush.msra.mxu0 0.0
        %192 = vmatpush.msra.mxu0 0.0
        %193 = vmatpush.msra.mxu0 0.0
        %194 = vmatpush.msra.mxu0 0.0
        %195 = vmatpush.msra.mxu0 0.0
        %196 = vmatpush.msra.mxu0 0.0
        %197 = vmatpush.msra.mxu0 0.0
        %198 = vmatpush.msra.mxu0 0.0
        %199 = vmatpush.msra.mxu0 0.0
        %200 = vmatpush.msra.mxu0 0.0
        %201 = vmatpush.msra.mxu0 0.0
        %202 = vmatpush.msra.mxu0 0.0
        %203 = vmatpush.msra.mxu0 0.0
        %204 = vmatpush.msra.mxu0 %v134
        %205 = vmatmul.f32.gmra.mxu0 %v181
        %v206 = vpop.f32.mrf.mxu0
        %v207 = vadd.f32 %v144, %v206
        %208 = vmatmul.f32.gmra.mxu0 %v184
        %v209 = vpop.f32.mrf.mxu0
        %v210 = vadd.f32 %v145, %v209
        %211 = vmatmul.f32.gmra.mxu0 %v187
        %v212 = vpop.f32.mrf.mxu0
        %v213 = vadd.f32 %v146, %v212
        %214 = vdwg.mxu0
        %vm215 = vcmp.eq.s32.totalorder %v140, 0
        %v216 = vrcp.pop %v207
        %v217 = vmul.f32 %v207, %v216
        %v218 = vsub.f32 1.0, %v217
        %v219 = vmul.f32 %v216, %v218
        %v220 = vadd.f32 %v216, %v219
        %vm221 = vweird.f32 %v207
        %vm222 = vweird.f32 %v216
        %vm223 = vmor %vm221, %vm222
        %v224 = vsel %vm223, %v216, %v220
        %v225 = vand.u32 2147483647, %v207
        %vm226 = vcmp.eq.f32.partialorder %v225, 8.507059e+37
        %v227 = vand.u32 %v207, 2147483648
        %v228 = vor.u32 1.1754944e-38, %v227
        %v229 = vsel %vm226, %v228, %v224
        %v230 = vmul.f32 1.0, %v229
        %v231 = vperm.slane %v230, 0
        %v232 = vmul.f32 %v207, %v231
        %v233 = vmul.f32 %v210, %v231
        %v234 = vmul.f32 %v213, %v231
        %v235 = vsel %vm215, 0.0, %v207
        %237 = vset.pattern.permute.xlu0 0
        %238 = vperm.xlu0 %237, %v232
        %v239 = vpop.permute.xlu0 %238
        %242 = vset.pattern.permute.xlu0 0
        %243 = vperm.xlu0 %242, %v233
        %v244 = vpop.permute.xlu0 %243
        %247 = vset.pattern.permute.xlu0 0
        %248 = vperm.xlu0 %247, %v234
        %v249 = vpop.permute.xlu0 %248
        %v251 = vperm.slane %v235, 0
        %v252 = vmul.f32 %v239, %v251
        %v253 = vmul.f32 %v244, %v251
        %v254 = vmul.f32 %v249, %v251
        %v255 = vsub.f32 %v207, %v252
        %v256 = vsub.f32 %v210, %v253
        %v257 = vsub.f32 %v213, %v254
        %v258 = vsel %vm215, 1, 0
        %vm259 = vcmp.eq.s32.totalorder %v258, 1
        %v260 = vsel %vm259, %v239, %v255
        %v261 = vsel %vm259, %v244, %v256
        %v262 = vsel %vm259, %v249, %v257
        %vm263 = vcmp.eq.s32.totalorder %v140, 1
        %v264 = vrcp.pop %v260
        %v265 = vmul.f32 %v260, %v264
        %v266 = vsub.f32 1.0, %v265
        %v267 = vmul.f32 %v264, %v266
        %v268 = vadd.f32 %v264, %v267
        %vm269 = vweird.f32 %v260
        %vm270 = vweird.f32 %v264
        %vm271 = vmor %vm269, %vm270
        %v272 = vsel %vm271, %v264, %v268
        %v273 = vand.u32 2147483647, %v260
        %vm274 = vcmp.eq.f32.partialorder %v273, 8.507059e+37
        %v275 = vand.u32 %v260, 2147483648
        %v276 = vor.u32 1.1754944e-38, %v275
        %v277 = vsel %vm274, %v276, %v272
        %v278 = vmul.f32 1.0, %v277
        %v279 = vperm.slane %v278, 1
        %v280 = vmul.f32 %v260, %v279
        %v281 = vmul.f32 %v261, %v279
        %v282 = vmul.f32 %v262, %v279
        %v283 = vsel %vm263, 0.0, %v260
        %285 = vset.pattern.permute.xlu0 1
        %286 = vperm.xlu0 %285, %v280
        %v287 = vpop.permute.xlu0 %286
        %290 = vset.pattern.permute.xlu0 1
        %291 = vperm.xlu0 %290, %v281
        %v292 = vpop.permute.xlu0 %291
        %295 = vset.pattern.permute.xlu0 1
        %296 = vperm.xlu0 %295, %v282
        %v297 = vpop.permute.xlu0 %296
        %v299 = vperm.slane %v283, 1
        %v300 = vmul.f32 %v287, %v299
        %v301 = vmul.f32 %v292, %v299
        %v302 = vmul.f32 %v297, %v299
        %v303 = vsub.f32 %v260, %v300
        %v304 = vsub.f32 %v261, %v301
        %v305 = vsub.f32 %v262, %v302
        %v306 = vsel %vm263, 1, 0
        %vm307 = vcmp.eq.s32.totalorder %v306, 1
        %v308 = vsel %vm307, %v287, %v303
        %v309 = vsel %vm307, %v292, %v304
        %v310 = vsel %vm307, %v297, %v305
        %vm311 = vcmp.eq.s32.totalorder %v140, 2
        %v312 = vrcp.pop %v308
        %v313 = vmul.f32 %v308, %v312
        %v314 = vsub.f32 1.0, %v313
        %v315 = vmul.f32 %v312, %v314
        %v316 = vadd.f32 %v312, %v315
        %vm317 = vweird.f32 %v308
        %vm318 = vweird.f32 %v312
        %vm319 = vmor %vm317, %vm318
        %v320 = vsel %vm319, %v312, %v316
        %v321 = vand.u32 2147483647, %v308
        %vm322 = vcmp.eq.f32.partialorder %v321, 8.507059e+37
        %v323 = vand.u32 %v308, 2147483648
        %v324 = vor.u32 1.1754944e-38, %v323
        %v325 = vsel %vm322, %v324, %v320
        %v326 = vmul.f32 1.0, %v325
        %v327 = vperm.slane %v326, 2
        %v328 = vmul.f32 %v308, %v327
        %v329 = vmul.f32 %v309, %v327
        %v330 = vmul.f32 %v310, %v327
        %v331 = vsel %vm311, 0.0, %v308
        %333 = vset.pattern.permute.xlu0 2
        %334 = vperm.xlu0 %333, %v328
        %v335 = vpop.permute.xlu0 %334
        %338 = vset.pattern.permute.xlu0 2
        %339 = vperm.xlu0 %338, %v329
        %v340 = vpop.permute.xlu0 %339
        %343 = vset.pattern.permute.xlu0 2
        %344 = vperm.xlu0 %343, %v330
        %v345 = vpop.permute.xlu0 %344
        %v347 = vperm.slane %v331, 2
        %v348 = vmul.f32 %v335, %v347
        %v349 = vmul.f32 %v340, %v347
        %v350 = vmul.f32 %v345, %v347
        %v351 = vsub.f32 %v308, %v348
        %v352 = vsub.f32 %v309, %v349
        %v353 = vsub.f32 %v310, %v350
        %v354 = vsel %vm311, 1, 0
        %vm355 = vcmp.eq.s32.totalorder %v354, 1
        %v356 = vsel %vm355, %v335, %v351
        %v357 = vsel %vm355, %v340, %v352
        %v358 = vsel %vm355, %v345, %v353
        %vm359 = vcmp.eq.s32.totalorder %v140, 3
        %v360 = vrcp.pop %v356
        %v361 = vmul.f32 %v356, %v360
        %v362 = vsub.f32 1.0, %v361
        %v363 = vmul.f32 %v360, %v362
        %v364 = vadd.f32 %v360, %v363
        %vm365 = vweird.f32 %v356
        %vm366 = vweird.f32 %v360
        %vm367 = vmor %vm365, %vm366
        %v368 = vsel %vm367, %v360, %v364
        %v369 = vand.u32 2147483647, %v356
        %vm370 = vcmp.eq.f32.partialorder %v369, 8.507059e+37
        %v371 = vand.u32 %v356, 2147483648
        %v372 = vor.u32 1.1754944e-38, %v371
        %v373 = vsel %vm370, %v372, %v368
        %v374 = vmul.f32 1.0, %v373
        %v375 = vperm.slane %v374, 3
        %v376 = vmul.f32 %v356, %v375
        %v377 = vmul.f32 %v357, %v375
        %v378 = vmul.f32 %v358, %v375
        %v379 = vsel %vm359, 0.0, %v356
        %381 = vset.pattern.permute.xlu0 3
        %382 = vperm.xlu0 %381, %v376
        %v383 = vpop.permute.xlu0 %382
        %386 = vset.pattern.permute.xlu0 3
        %387 = vperm.xlu0 %386, %v377
        %v388 = vpop.permute.xlu0 %387
        %391 = vset.pattern.permute.xlu0 3
        %392 = vperm.xlu0 %391, %v378
        %v393 = vpop.permute.xlu0 %392
        %v395 = vperm.slane %v379, 3
        %v396 = vmul.f32 %v383, %v395
        %v397 = vmul.f32 %v388, %v395
        %v398 = vmul.f32 %v393, %v395
        %v399 = vsub.f32 %v356, %v396
        %v400 = vsub.f32 %v357, %v397
        %v401 = vsub.f32 %v358, %v398
        %v402 = vsel %vm359, 1, 0
        %vm403 = vcmp.eq.s32.totalorder %v402, 1
        %v404 = vsel %vm403, %v383, %v399
        %v405 = vsel %vm403, %v388, %v400
        %v406 = vsel %vm403, %v393, %v401
        %vm407 = vcmp.eq.s32.totalorder %v140, 4
        %v408 = vrcp.pop %v404
        %v409 = vmul.f32 %v404, %v408
        %v410 = vsub.f32 1.0, %v409
        %v411 = vmul.f32 %v408, %v410
        %v412 = vadd.f32 %v408, %v411
        %vm413 = vweird.f32 %v404
        %vm414 = vweird.f32 %v408
        %vm415 = vmor %vm413, %vm414
        %v416 = vsel %vm415, %v408, %v412
        %v417 = vand.u32 2147483647, %v404
        %vm418 = vcmp.eq.f32.partialorder %v417, 8.507059e+37
        %v419 = vand.u32 %v404, 2147483648
        %v420 = vor.u32 1.1754944e-38, %v419
        %v421 = vsel %vm418, %v420, %v416
        %v422 = vmul.f32 1.0, %v421
        %v423 = vperm.slane %v422, 4
        %v424 = vmul.f32 %v404, %v423
        %v425 = vmul.f32 %v405, %v423
        %v426 = vmul.f32 %v406, %v423
        %v427 = vsel %vm407, 0.0, %v404
        %429 = vset.pattern.permute.xlu0 4
        %430 = vperm.xlu0 %429, %v424
        %v431 = vpop.permute.xlu0 %430
        %434 = vset.pattern.permute.xlu0 4
        %435 = vperm.xlu0 %434, %v425
        %v436 = vpop.permute.xlu0 %435
        %439 = vset.pattern.permute.xlu0 4
        %440 = vperm.xlu0 %439, %v426
        %v441 = vpop.permute.xlu0 %440
        %v443 = vperm.slane %v427, 4
        %v444 = vmul.f32 %v431, %v443
        %v445 = vmul.f32 %v436, %v443
        %v446 = vmul.f32 %v441, %v443
        %v447 = vsub.f32 %v404, %v444
        %v448 = vsub.f32 %v405, %v445
        %v449 = vsub.f32 %v406, %v446
        %v450 = vsel %vm407, 1, 0
        %vm451 = vcmp.eq.s32.totalorder %v450, 1
        %v452 = vsel %vm451, %v431, %v447
        %v453 = vsel %vm451, %v436, %v448
        %v454 = vsel %vm451, %v441, %v449
        %vm455 = vcmp.eq.s32.totalorder %v140, 5
        %v456 = vrcp.pop %v452
        %v457 = vmul.f32 %v452, %v456
        %v458 = vsub.f32 1.0, %v457
        %v459 = vmul.f32 %v456, %v458
        %v460 = vadd.f32 %v456, %v459
        %vm461 = vweird.f32 %v452
        %vm462 = vweird.f32 %v456
        %vm463 = vmor %vm461, %vm462
        %v464 = vsel %vm463, %v456, %v460
        %v465 = vand.u32 2147483647, %v452
        %vm466 = vcmp.eq.f32.partialorder %v465, 8.507059e+37
        %v467 = vand.u32 %v452, 2147483648
        %v468 = vor.u32 1.1754944e-38, %v467
        %v469 = vsel %vm466, %v468, %v464
        %v470 = vmul.f32 1.0, %v469
        %v471 = vperm.slane %v470, 5
        %v472 = vmul.f32 %v452, %v471
        %v473 = vmul.f32 %v453, %v471
        %v474 = vmul.f32 %v454, %v471
        %v475 = vsel %vm455, 0.0, %v452
        %477 = vset.pattern.permute.xlu0 5
        %478 = vperm.xlu0 %477, %v472
        %v479 = vpop.permute.xlu0 %478
        %482 = vset.pattern.permute.xlu0 5
        %483 = vperm.xlu0 %482, %v473
        %v484 = vpop.permute.xlu0 %483
        %487 = vset.pattern.permute.xlu0 5
        %488 = vperm.xlu0 %487, %v474
        %v489 = vpop.permute.xlu0 %488
        %v491 = vperm.slane %v475, 5
        %v492 = vmul.f32 %v479, %v491
        %v493 = vmul.f32 %v484, %v491
        %v494 = vmul.f32 %v489, %v491
        %v495 = vsub.f32 %v452, %v492
        %v496 = vsub.f32 %v453, %v493
        %v497 = vsub.f32 %v454, %v494
        %v498 = vsel %vm455, 1, 0
        %vm499 = vcmp.eq.s32.totalorder %v498, 1
        %v500 = vsel %vm499, %v479, %v495
        %v501 = vsel %vm499, %v484, %v496
        %v502 = vsel %vm499, %v489, %v497
        %vm503 = vcmp.eq.s32.totalorder %v140, 6
        %v504 = vrcp.pop %v500
        %v505 = vmul.f32 %v500, %v504
        %v506 = vsub.f32 1.0, %v505
        %v507 = vmul.f32 %v504, %v506
        %v508 = vadd.f32 %v504, %v507
        %vm509 = vweird.f32 %v500
        %vm510 = vweird.f32 %v504
        %vm511 = vmor %vm509, %vm510
        %v512 = vsel %vm511, %v504, %v508
        %v513 = vand.u32 2147483647, %v500
        %vm514 = vcmp.eq.f32.partialorder %v513, 8.507059e+37
        %v515 = vand.u32 %v500, 2147483648
        %v516 = vor.u32 1.1754944e-38, %v515
        %v517 = vsel %vm514, %v516, %v512
        %v518 = vmul.f32 1.0, %v517
        %v519 = vperm.slane %v518, 6
        %v520 = vmul.f32 %v500, %v519
        %v521 = vmul.f32 %v501, %v519
        %v522 = vmul.f32 %v502, %v519
        %v523 = vsel %vm503, 0.0, %v500
        %525 = vset.pattern.permute.xlu0 6
        %526 = vperm.xlu0 %525, %v520
        %v527 = vpop.permute.xlu0 %526
        %530 = vset.pattern.permute.xlu0 6
        %531 = vperm.xlu0 %530, %v521
        %v532 = vpop.permute.xlu0 %531
        %535 = vset.pattern.permute.xlu0 6
        %536 = vperm.xlu0 %535, %v522
        %v537 = vpop.permute.xlu0 %536
        %v539 = vperm.slane %v523, 6
        %v540 = vmul.f32 %v527, %v539
        %v541 = vmul.f32 %v532, %v539
        %v542 = vmul.f32 %v537, %v539
        %v543 = vsub.f32 %v500, %v540
        %v544 = vsub.f32 %v501, %v541
        %v545 = vsub.f32 %v502, %v542
        %v546 = vsel %vm503, 1, 0
        %vm547 = vcmp.eq.s32.totalorder %v546, 1
        %v548 = vsel %vm547, %v527, %v543
        %v549 = vsel %vm547, %v532, %v544
        %v550 = vsel %vm547, %v537, %v545
        %vm551 = vcmp.eq.s32.totalorder %v140, 7
        %v552 = vrcp.pop %v548
        %v553 = vmul.f32 %v548, %v552
        %v554 = vsub.f32 1.0, %v553
        %v555 = vmul.f32 %v552, %v554
        %v556 = vadd.f32 %v552, %v555
        %vm557 = vweird.f32 %v548
        %vm558 = vweird.f32 %v552
        %vm559 = vmor %vm557, %vm558
        %v560 = vsel %vm559, %v552, %v556
        %v561 = vand.u32 2147483647, %v548
        %vm562 = vcmp.eq.f32.partialorder %v561, 8.507059e+37
        %v563 = vand.u32 %v548, 2147483648
        %v564 = vor.u32 1.1754944e-38, %v563
        %v565 = vsel %vm562, %v564, %v560
        %v566 = vmul.f32 1.0, %v565
        %v567 = vperm.slane %v566, 7
        %v568 = vmul.f32 %v549, %v567
        %v569 = vmul.f32 %v550, %v567
        %v570 = vsel %vm551, 0.0, %v548
        %572 = vset.pattern.permute.xlu0 7
        %573 = vperm.xlu0 %572, %v568
        %v574 = vpop.permute.xlu0 %573
        %577 = vset.pattern.permute.xlu0 7
        %578 = vperm.xlu0 %577, %v569
        %v579 = vpop.permute.xlu0 %578
        %v581 = vperm.slane %v570, 7
        %v582 = vmul.f32 %v574, %v581
        %v583 = vmul.f32 %v579, %v581
        %v584 = vsub.f32 %v549, %v582
        %v585 = vsub.f32 %v550, %v583
        %v586 = vsel %vm551, 1, 0
        %vm587 = vcmp.eq.s32.totalorder %v586, 1
        %v588 = vsel %vm587, %v574, %v584
        %v589 = vsel %vm587, %v579, %v585
        %vm590 = vcmp.eq.s32.totalorder %v140, 8
        %v591 = vrcp.pop %v588
        %v592 = vmul.f32 %v588, %v591
        %v593 = vsub.f32 1.0, %v592
        %v594 = vmul.f32 %v591, %v593
        %v595 = vadd.f32 %v591, %v594
        %vm596 = vweird.f32 %v588
        %vm597 = vweird.f32 %v591
        %vm598 = vmor %vm596, %vm597
        %v599 = vsel %vm598, %v591, %v595
        %v600 = vand.u32 2147483647, %v588
        %vm601 = vcmp.eq.f32.partialorder %v600, 8.507059e+37
        %v602 = vand.u32 %v588, 2147483648
        %v603 = vor.u32 1.1754944e-38, %v602
        %v604 = vsel %vm601, %v603, %v599
        %v605 = vmul.f32 1.0, %v604
        %v606 = vperm.slane %v605, 0
        %v607 = vmul.f32 %v588, %v606
        %v608 = vmul.f32 %v589, %v606
        %v609 = vsel %vm590, 0.0, %v588
        %611 = vset.pattern.permute.xlu0 8
        %612 = vperm.xlu0 %611, %v607
        %v613 = vpop.permute.xlu0 %612
        %616 = vset.pattern.permute.xlu0 8
        %617 = vperm.xlu0 %616, %v608
        %v618 = vpop.permute.xlu0 %617
        %v620 = vperm.slane %v609, 0
        %v621 = vmul.f32 %v613, %v620
        %v622 = vmul.f32 %v618, %v620
        %v623 = vsub.f32 %v588, %v621
        %v624 = vsub.f32 %v589, %v622
        %v625 = vsel %vm590, 1, 0
        %vm626 = vcmp.eq.s32.totalorder %v625, 1
        %v627 = vsel %vm626, %v613, %v623
        %v628 = vsel %vm626, %v618, %v624
        %vm629 = vcmp.eq.s32.totalorder %v140, 9
        %v630 = vrcp.pop %v627
        %v631 = vmul.f32 %v627, %v630
        %v632 = vsub.f32 1.0, %v631
        %v633 = vmul.f32 %v630, %v632
        %v634 = vadd.f32 %v630, %v633
        %vm635 = vweird.f32 %v627
        %vm636 = vweird.f32 %v630
        %vm637 = vmor %vm635, %vm636
        %v638 = vsel %vm637, %v630, %v634
        %v639 = vand.u32 2147483647, %v627
        %vm640 = vcmp.eq.f32.partialorder %v639, 8.507059e+37
        %v641 = vand.u32 %v627, 2147483648
        %v642 = vor.u32 1.1754944e-38, %v641
        %v643 = vsel %vm640, %v642, %v638
        %v644 = vmul.f32 1.0, %v643
        %v645 = vperm.slane %v644, 1
        %v646 = vmul.f32 %v627, %v645
        %v647 = vmul.f32 %v628, %v645
        %v648 = vsel %vm629, 0.0, %v627
        %650 = vset.pattern.permute.xlu0 9
        %651 = vperm.xlu0 %650, %v646
        %v652 = vpop.permute.xlu0 %651
        %655 = vset.pattern.permute.xlu0 9
        %656 = vperm.xlu0 %655, %v647
        %v657 = vpop.permute.xlu0 %656
        %v659 = vperm.slane %v648, 1
        %v660 = vmul.f32 %v652, %v659
        %v661 = vmul.f32 %v657, %v659
        %v662 = vsub.f32 %v627, %v660
        %v663 = vsub.f32 %v628, %v661
        %v664 = vsel %vm629, 1, 0
        %vm665 = vcmp.eq.s32.totalorder %v664, 1
        %v666 = vsel %vm665, %v652, %v662
        %v667 = vsel %vm665, %v657, %v663
        %vm668 = vcmp.eq.s32.totalorder %v140, 10
        %v669 = vrcp.pop %v666
        %v670 = vmul.f32 %v666, %v669
        %v671 = vsub.f32 1.0, %v670
        %v672 = vmul.f32 %v669, %v671
        %v673 = vadd.f32 %v669, %v672
        %vm674 = vweird.f32 %v666
        %vm675 = vweird.f32 %v669
        %vm676 = vmor %vm674, %vm675
        %v677 = vsel %vm676, %v669, %v673
        %v678 = vand.u32 2147483647, %v666
        %vm679 = vcmp.eq.f32.partialorder %v678, 8.507059e+37
        %v680 = vand.u32 %v666, 2147483648
        %v681 = vor.u32 1.1754944e-38, %v680
        %v682 = vsel %vm679, %v681, %v677
        %v683 = vmul.f32 1.0, %v682
        %v684 = vperm.slane %v683, 2
        %v685 = vmul.f32 %v666, %v684
        %v686 = vmul.f32 %v667, %v684
        %v687 = vsel %vm668, 0.0, %v666
        %689 = vset.pattern.permute.xlu0 10
        %690 = vperm.xlu0 %689, %v685
        %v691 = vpop.permute.xlu0 %690
        %694 = vset.pattern.permute.xlu0 10
        %695 = vperm.xlu0 %694, %v686
        %v696 = vpop.permute.xlu0 %695
        %v698 = vperm.slane %v687, 2
        %v699 = vmul.f32 %v691, %v698
        %v700 = vmul.f32 %v696, %v698
        %v701 = vsub.f32 %v666, %v699
        %v702 = vsub.f32 %v667, %v700
        %v703 = vsel %vm668, 1, 0
        %vm704 = vcmp.eq.s32.totalorder %v703, 1
        %v705 = vsel %vm704, %v691, %v701
        %v706 = vsel %vm704, %v696, %v702
        %vm707 = vcmp.eq.s32.totalorder %v140, 11
        %v708 = vrcp.pop %v705
        %v709 = vmul.f32 %v705, %v708
        %v710 = vsub.f32 1.0, %v709
        %v711 = vmul.f32 %v708, %v710
        %v712 = vadd.f32 %v708, %v711
        %vm713 = vweird.f32 %v705
        %vm714 = vweird.f32 %v708
        %vm715 = vmor %vm713, %vm714
        %v716 = vsel %vm715, %v708, %v712
        %v717 = vand.u32 2147483647, %v705
        %vm718 = vcmp.eq.f32.partialorder %v717, 8.507059e+37
        %v719 = vand.u32 %v705, 2147483648
        %v720 = vor.u32 1.1754944e-38, %v719
        %v721 = vsel %vm718, %v720, %v716
        %v722 = vmul.f32 1.0, %v721
        %v723 = vperm.slane %v722, 3
        %v724 = vmul.f32 %v705, %v723
        %v725 = vmul.f32 %v706, %v723
        %v726 = vsel %vm707, 0.0, %v705
        %728 = vset.pattern.permute.xlu0 11
        %729 = vperm.xlu0 %728, %v724
        %v730 = vpop.permute.xlu0 %729
        %733 = vset.pattern.permute.xlu0 11
        %734 = vperm.xlu0 %733, %v725
        %v735 = vpop.permute.xlu0 %734
        %v737 = vperm.slane %v726, 3
        %v738 = vmul.f32 %v730, %v737
        %v739 = vmul.f32 %v735, %v737
        %v740 = vsub.f32 %v705, %v738
        %v741 = vsub.f32 %v706, %v739
        %v742 = vsel %vm707, 1, 0
        %vm743 = vcmp.eq.s32.totalorder %v742, 1
        %v744 = vsel %vm743, %v730, %v740
        %v745 = vsel %vm743, %v735, %v741
        %vm746 = vcmp.eq.s32.totalorder %v140, 12
        %v747 = vrcp.pop %v744
        %v748 = vmul.f32 %v744, %v747
        %v749 = vsub.f32 1.0, %v748
        %v750 = vmul.f32 %v747, %v749
        %v751 = vadd.f32 %v747, %v750
        %vm752 = vweird.f32 %v744
        %vm753 = vweird.f32 %v747
        %vm754 = vmor %vm752, %vm753
        %v755 = vsel %vm754, %v747, %v751
        %v756 = vand.u32 2147483647, %v744
        %vm757 = vcmp.eq.f32.partialorder %v756, 8.507059e+37
        %v758 = vand.u32 %v744, 2147483648
        %v759 = vor.u32 1.1754944e-38, %v758
        %v760 = vsel %vm757, %v759, %v755
        %v761 = vmul.f32 1.0, %v760
        %v762 = vperm.slane %v761, 4
        %v763 = vmul.f32 %v744, %v762
        %v764 = vmul.f32 %v745, %v762
        %v765 = vsel %vm746, 0.0, %v744
        %767 = vset.pattern.permute.xlu0 12
        %768 = vperm.xlu0 %767, %v763
        %v769 = vpop.permute.xlu0 %768
        %772 = vset.pattern.permute.xlu0 12
        %773 = vperm.xlu0 %772, %v764
        %v774 = vpop.permute.xlu0 %773
        %v776 = vperm.slane %v765, 4
        %v777 = vmul.f32 %v769, %v776
        %v778 = vmul.f32 %v774, %v776
        %v779 = vsub.f32 %v744, %v777
        %v780 = vsub.f32 %v745, %v778
        %v781 = vsel %vm746, 1, 0
        %vm782 = vcmp.eq.s32.totalorder %v781, 1
        %v783 = vsel %vm782, %v769, %v779
        %v784 = vsel %vm782, %v774, %v780
        %vm785 = vcmp.eq.s32.totalorder %v140, 13
        %v786 = vrcp.pop %v783
        %v787 = vmul.f32 %v783, %v786
        %v788 = vsub.f32 1.0, %v787
        %v789 = vmul.f32 %v786, %v788
        %v790 = vadd.f32 %v786, %v789
        %vm791 = vweird.f32 %v783
        %vm792 = vweird.f32 %v786
        %vm793 = vmor %vm791, %vm792
        %v794 = vsel %vm793, %v786, %v790
        %v795 = vand.u32 2147483647, %v783
        %vm796 = vcmp.eq.f32.partialorder %v795, 8.507059e+37
        %v797 = vand.u32 %v783, 2147483648
        %v798 = vor.u32 1.1754944e-38, %v797
        %v799 = vsel %vm796, %v798, %v794
        %v800 = vmul.f32 1.0, %v799
        %v801 = vperm.slane %v800, 5
        %v802 = vmul.f32 %v783, %v801
        %v803 = vmul.f32 %v784, %v801
        %v804 = vsel %vm785, 0.0, %v783
        %806 = vset.pattern.permute.xlu0 13
        %807 = vperm.xlu0 %806, %v802
        %v808 = vpop.permute.xlu0 %807
        %811 = vset.pattern.permute.xlu0 13
        %812 = vperm.xlu0 %811, %v803
        %v813 = vpop.permute.xlu0 %812
        %v815 = vperm.slane %v804, 5
        %v816 = vmul.f32 %v808, %v815
        %v817 = vmul.f32 %v813, %v815
        %v818 = vsub.f32 %v783, %v816
        %v819 = vsub.f32 %v784, %v817
        %v820 = vsel %vm785, 1, 0
        %vm821 = vcmp.eq.s32.totalorder %v820, 1
        %v822 = vsel %vm821, %v808, %v818
        %v823 = vsel %vm821, %v813, %v819
        %vm824 = vcmp.eq.s32.totalorder %v140, 14
        %v825 = vrcp.pop %v822
        %v826 = vmul.f32 %v822, %v825
        %v827 = vsub.f32 1.0, %v826
        %v828 = vmul.f32 %v825, %v827
        %v829 = vadd.f32 %v825, %v828
        %vm830 = vweird.f32 %v822
        %vm831 = vweird.f32 %v825
        %vm832 = vmor %vm830, %vm831
        %v833 = vsel %vm832, %v825, %v829
        %v834 = vand.u32 2147483647, %v822
        %vm835 = vcmp.eq.f32.partialorder %v834, 8.507059e+37
        %v836 = vand.u32 %v822, 2147483648
        %v837 = vor.u32 1.1754944e-38, %v836
        %v838 = vsel %vm835, %v837, %v833
        %v839 = vmul.f32 1.0, %v838
        %v840 = vperm.slane %v839, 6
        %v841 = vmul.f32 %v822, %v840
        %v842 = vmul.f32 %v823, %v840
        %v843 = vsel %vm824, 0.0, %v822
        %845 = vset.pattern.permute.xlu0 14
        %846 = vperm.xlu0 %845, %v841
        %v847 = vpop.permute.xlu0 %846
        %850 = vset.pattern.permute.xlu0 14
        %851 = vperm.xlu0 %850, %v842
        %v852 = vpop.permute.xlu0 %851
        %v854 = vperm.slane %v843, 6
        %v855 = vmul.f32 %v847, %v854
        %v856 = vmul.f32 %v852, %v854
        %v857 = vsub.f32 %v822, %v855
        %v858 = vsub.f32 %v823, %v856
        %v859 = vsel %vm824, 1, 0
        %vm860 = vcmp.eq.s32.totalorder %v859, 1
        %v861 = vsel %vm860, %v847, %v857
        %v862 = vsel %vm860, %v852, %v858
        %vm863 = vcmp.eq.s32.totalorder %v140, 15
        %v864 = vrcp.pop %v861
        %v865 = vmul.f32 %v861, %v864
        %v866 = vsub.f32 1.0, %v865
        %v867 = vmul.f32 %v864, %v866
        %v868 = vadd.f32 %v864, %v867
        %vm869 = vweird.f32 %v861
        %vm870 = vweird.f32 %v864
        %vm871 = vmor %vm869, %vm870
        %v872 = vsel %vm871, %v864, %v868
        %v873 = vand.u32 2147483647, %v861
        %vm874 = vcmp.eq.f32.partialorder %v873, 8.507059e+37
        %v875 = vand.u32 %v861, 2147483648
        %v876 = vor.u32 1.1754944e-38, %v875
        %v877 = vsel %vm874, %v876, %v872
        %v878 = vmul.f32 1.0, %v877
        %v879 = vperm.slane %v878, 7
        %v880 = vmul.f32 %v862, %v879
        %v881 = vsel %vm863, 0.0, %v861
        %883 = vset.pattern.permute.xlu0 15
        %884 = vperm.xlu0 %883, %v880
        %v885 = vpop.permute.xlu0 %884
        %v887 = vperm.slane %v881, 7
        %v888 = vmul.f32 %v885, %v887
        %v889 = vsub.f32 %v862, %v888
        %v890 = vsel %vm863, 1, 0
        %vm891 = vcmp.eq.s32.totalorder %v890, 1
        %v892 = vsel %vm891, %v885, %v889
        %vm893 = vcmask 123904
        %894 = vst.msk [vmem:[%s133] sm:$0x3] %vm893, %v892
        %s895 = sand.u32 %s52, 1
        %s896 = scalar_lea.sflag [#allocation4], %s895
        %s897 = sand.u32 %s52, 1
        %s898 = smul.addr %s897, 2
        %s899 = scalar_lea.vmem [#allocation5], %s898
        // Predicated region
        $region29: #{tpu_custom_call.1} parent=23 // pred_check
          %p900 = pneg %p62
        $region30: #{tpu_custom_call.1} parent=23 // pred_check_branch
          %902 = sbr.rel (%p900) target = $region32
        $region31: #{tpu_custom_call.1} parent=23 // pred_region
          %904 = vsyncadd %s896, 0
          %s905 = smul.addr %s18, 2
          %s906 = scalar_lea.hbm %s1, %s905
          %s908 = sshll.u32 %s899, 4
          %s909 = int_to_ptr.vmem [resolvable:$true] %s908
          %s910 = sshll.u32 %s906, 4
          %s911 = int_to_ptr.hbm [resolvable:$true] %s910
          %913 = dma.vmem_to_hbm [thread:$0]  %s909, 32, %s911, %s896
        $region32: #{tpu_custom_call.1} parent=23 // pred_fallthru
          _
      $region24: #{tpu_custom_call.1} parent=5 // pred_fallthru
        _
      %p914 = scmp.le.s32.totalorder 2, %s13
      // Predicated region
      $region33: #{tpu_custom_call.1} parent=5 // pred_check
        %p915 = pneg %p914
      $region34: #{tpu_custom_call.1} parent=5 // pred_check_branch
        %917 = sbr.rel (%p915) target = $region36
      $region35: #{tpu_custom_call.1} parent=5 // pred_region
        %s918 = ssub.s32 %s13, 2
        // Predicated region
        $region37: #{tpu_custom_call.1} parent=35 // pred_check
          %p919 = pneg %p68
        $region38: #{tpu_custom_call.1} parent=35 // pred_check_branch
          %921 = sbr.rel (%p919) target = $region40
        $region39: #{tpu_custom_call.1} parent=35 // pred_region
          %s922 = sand.u32 %s53, 1
          %s923 = scalar_lea.sflag [#allocation4], %s922
          %s924 = sand.u32 %s53, 1
          %s925 = smul.addr %s924, 2
          %s926 = scalar_lea.vmem [#allocation5], %s925
          %928 = dma.done %s923, 32
        $region40: #{tpu_custom_call.1} parent=35 // pred_fallthru
          _
      $region36: #{tpu_custom_call.1} parent=5 // pred_fallthru
        _
    $region6: #{tpu_custom_call.1} parent=1 // loop_footer
      %s17 = sadd.s32 1, %s13
    $region7: #{tpu_custom_call.1} parent=1 // loop_footer_branch
      %12 = sbr.rel target = $region3
    $region8: #{tpu_custom_call.1} parent=1 // loop_exit
      _
    %929 = vsyncpa [#allocation3], 1
    %s930 = scalar_lea.sflag [#allocation3], 1
    %931 = vsyncpa %s930, 1
    %932 = vsyncpa [#allocation4], 1
    %s933 = scalar_lea.sflag [#allocation4], 1
    %934 = vsyncpa %s933, 1

</llo_original>
